<compile_context>
chip_gen: v7x
topology: tpu7x:2x2x1
jax: 0.10.0
libtpu: 0.0.40
codegen_flags: <defaults>
</compile_context>

<pallas_src>
import functools
import math

import jax
import jax.numpy as jnp
from jax.experimental import pallas as pl
from jax.experimental.pallas import tpu as pltpu

ALPHA = 0.1
BETA = 1.0
NUM_CLASSES = 5
_LOG_CLIP = math.log(1e-7)


def _sce_kernel(logits_ref, targets_ref, out_ref, acc_ref, *,
                alpha, beta, n_valid, n_inner, tile):
    o = pl.program_id(0)
    i = pl.program_id(1)

    @pl.when(i == 0)
    def _():
        acc_ref[...] = jnp.zeros_like(acc_ref)

    logits = logits_ref[...].astype(jnp.float32)        # (C, TN) lane-dense
    tgt = targets_ref[...]                              # (1, TN) int32
    c, tn = logits.shape

    # Numerically-stable log-softmax over the class (sublane) axis.
    m = jnp.max(logits, axis=0, keepdims=True)          # (1, TN)
    shifted = logits - m
    lse = jnp.log(jnp.sum(jnp.exp(shifted), axis=0, keepdims=True))

    # Target-class shifted logit via iota compare (no explicit one-hot mult).
    # NOTE: targets outside [0, C) contribute 0 loss instead of erroring
    # (PyTorch CrossEntropyLoss would raise) — same as the padding sentinel.
    class_ids = jax.lax.broadcasted_iota(jnp.int32, (c, tn), 0)
    t_shift = jnp.sum(jnp.where(class_ids == tgt, shifted, 0.0),
                      axis=0, keepdims=True)            # (1, TN)
    log_p_t = t_shift - lse                             # log_softmax[target]

    # alpha*CE + beta*RCE per sample; RCE's log(clip(p, 1e-7, 1)) is exactly
    # max(log_softmax, log 1e-7) since log_softmax <= 0.
    per_sample = -(alpha * log_p_t + beta * jnp.maximum(log_p_t, _LOG_CLIP))

    # Ragged-tail / duplicated-step mask.  Uses the UNCLAMPED linear block
    # index so clamped re-reads of the last block contribute exactly 0, and
    # garbage (possibly NaN) tail lanes are select-ed away, not multiplied.
    linear_block = o * n_inner + i
    lane = jax.lax.broadcasted_iota(jnp.int32, (1, tn), 1)
    valid = (linear_block * tile + lane) < n_valid
    per_sample = jnp.where(valid, per_sample, 0.0)

    # Fold the tile into the narrow accumulator (static 128-aligned slices are
    # free vreg views; pairwise tree keeps the add chain short).
    accw = acc_ref.shape[1]
    strips = [per_sample[:, k * accw:(k + 1) * accw] for k in range(tn // accw)]
    while len(strips) > 1:
        nxt = [a + b for a, b in zip(strips[0::2], strips[1::2])]
        if len(strips) % 2:
            nxt.append(strips[-1])
        strips = nxt
    acc_ref[...] += strips[0]

    @pl.when(i == pl.num_programs(1) - 1)
    def _():
        out_ref[...] = acc_ref[...]


def _round_up(x, m):
    return ((x + m - 1) // m) * m


def symmetric_cross_entropy(logits, targets, *, alpha=ALPHA, beta=BETA,
                            reduction="mean", tile_n=32768):
    """logits: (N, C) float (f32 or bf16), targets: (N,) int.  Scalar f32 loss."""
    n, c = logits.shape
    # TODO(synk): reduction='none' (per-sample vector output) not implemented.
    assert reduction in ("mean", "sum")

    # Lane-dense layout (single relayout pass; see header note about producing
    # (C, N) upstream to eliminate it).  No padding — tail is masked in-kernel.
    logits_cn = jnp.transpose(logits)                        # (C, N)
    targets_row = targets.astype(jnp.int32).reshape(1, n)    # (1, N)

    # Batch tile: as many 128-lane groups as possible.  For N < 128 a single
    # block spans the full (unpadded) lane extent, which satisfies the
    # (8, 128) block constraint via block == full dim.
    if n < 128:
        tile = n
    else:
        tile = min(_round_up(tile_n, 128), (n // 128) * 128)
    accw = min(128, tile)
    assert tile % accw == 0

    n_blocks = pl.cdiv(n, tile)
    n_outer = 2 if n_blocks >= 2 else 1      # feeds both v7x TensorCores
    n_inner = pl.cdiv(n_blocks, n_outer)

    def lane_block(o, i):
        # Clamp: grid steps past the last real block re-read it; the kernel's
        # unclamped mask zeroes their contribution.
        return jnp.minimum(o * n_inner + i, n_blocks - 1)

    kernel = functools.partial(_sce_kernel, alpha=float(alpha),
                               beta=float(beta), n_valid=n,
                               n_inner=n_inner, tile=tile)

    partials = pl.pallas_call(
        kernel,
        out_shape=jax.ShapeDtypeStruct((1, n_outer * accw), jnp.float32),
        grid_spec=pltpu.PrefetchScalarGridSpec(
            num_scalar_prefetch=0,
            grid=(n_outer, n_inner),
            in_specs=[
                pl.BlockSpec((c, tile), lambda o, i: (0, lane_block(o, i))),
                pl.BlockSpec((1, tile), lambda o, i: (0, lane_block(o, i))),
            ],
            out_specs=pl.BlockSpec((1, accw), lambda o, i: (0, o)),
            scratch_shapes=[pltpu.VMEM((1, accw), jnp.float32)],
        ),
        compiler_params=pltpu.CompilerParams(
            dimension_semantics=("parallel", "arbitrary")),
    )(logits_cn, targets_row)

    total = jnp.sum(partials)
    if reduction == "mean":
        total = total / jnp.float32(n)
    return total


def _reference(logits, targets, alpha=ALPHA, beta=BETA, num_classes=NUM_CLASSES):
    onehot = jax.nn.one_hot(targets, num_classes, dtype=jnp.float32)
    log_probs = jax.nn.log_softmax(logits.astype(jnp.float32), axis=1)
    ce = -jnp.sum(onehot * log_probs, axis=1)
    probs = jax.nn.softmax(logits.astype(jnp.float32), axis=1)
    rce = -jnp.sum(onehot * jnp.log(jnp.clip(probs, 1e-7, 1.0)), axis=1)
    return alpha * jnp.mean(ce) + beta * jnp.mean(rce)


if __name__ == "__main__":
    key = jax.random.PRNGKey(0)
    k1, k2, k3, k4, k5, k6 = jax.random.split(key, 6)
    C = NUM_CLASSES

    # Small batch (single block, lane dim < 128).
    N = 16
    logits = jax.random.normal(k1, (N, C), dtype=jnp.float32) * 3.0
    targets = jax.random.randint(k2, (N,), 0, C, dtype=jnp.int32)
    loss = jax.block_until_ready(symmetric_cross_entropy(logits, targets))
    ref = _reference(logits, targets)
    assert jnp.allclose(loss, ref, rtol=1e-5, atol=1e-5), (loss, ref)

    # Ragged small batch.
    N2 = 50
    logits2 = jax.random.normal(k3, (N2, C), dtype=jnp.float32) * 3.0
    targets2 = jax.random.randint(k4, (N2,), 0, C, dtype=jnp.int32)
    loss2 = jax.block_until_ready(symmetric_cross_entropy(logits2, targets2))
    ref2 = _reference(logits2, targets2)
    assert jnp.allclose(loss2, ref2, rtol=1e-5, atol=1e-5), (loss2, ref2)

    # Multi-block ragged batch with a tiny tile: exercises the 2-D grid
    # (parallel outer x arbitrary inner), index clamping, the partial edge
    # block, and the in-kernel tail mask.
    N3 = 300
    logits3 = jax.random.normal(k5, (N3, C), dtype=jnp.float32) * 3.0
    targets3 = jax.random.randint(k6, (N3,), 0, C, dtype=jnp.int32)
    loss3 = jax.block_until_ready(
        symmetric_cross_entropy(logits3, targets3, tile_n=128))
    ref3 = _reference(logits3, targets3)
    assert jnp.allclose(loss3, ref3, rtol=1e-5, atol=1e-5), (loss3, ref3)

    # 'sum' reduction path.
    loss_sum = jax.block_until_ready(
        symmetric_cross_entropy(logits2, targets2, reduction="sum"))
    ref_sum = ref2 * N2
    assert jnp.allclose(loss_sum, ref_sum, rtol=1e-5, atol=1e-4), (loss_sum, ref_sum)

    print("KERNEL_OK")
</pallas_src>

<mosaic_0001>
module attributes {stable_mosaic.version = 11 : i64} {
  func.func @_sce_kernel(%arg0: i32, %arg1: i32, %arg2: memref<5x16xf32, #tpu.memory_space<vmem>>, %arg3: memref<1x16xi32, #tpu.memory_space<vmem>>, %arg4: memref<1x16xf32, #tpu.memory_space<vmem>>, %arg5: memref<1x16xf32, #tpu.memory_space<vmem>>) attributes {dimension_semantics = [#tpu.dimension_semantics<parallel>, #tpu.dimension_semantics<arbitrary>], iteration_bounds = array<i64: 1, 1>, scalar_prefetch = 0 : i64, scratch_operands = 1 : i64, tpu.core_type = #tpu.core_type<tc>, window_params = [{transform_indices = @transform_0, window_bounds = array<i64: 5, 16>}, {transform_indices = @transform_1, window_bounds = array<i64: 1, 16>}, {transform_indices = @transform_2, window_bounds = array<i64: 1, 16>}]} {
    %c0_i32 = arith.constant 0 : i32
    %0 = arith.cmpi eq, %arg1, %c0_i32 : i32
    %1 = arith.extui %0 : i1 to i32
    %c0_i32_0 = arith.constant 0 : i32
    %2 = arith.cmpi ne, %1, %c0_i32_0 : i32
    scf.if %2 {
      %cst_19 = arith.constant 0.000000e+00 : f32
      %46 = vector.broadcast %cst_19 : f32 to vector<1x16xf32>
      %c0_20 = arith.constant 0 : index
      %c0_21 = arith.constant 0 : index
      %47 = vector.load %arg5[%c0_20, %c0_21] : memref<1x16xf32, #tpu.memory_space<vmem>>, vector<1x16xf32>
      tpu.vector_store %arg5[%c0_20, %c0_21], %46 {strides = array<i32>} : memref<1x16xf32, #tpu.memory_space<vmem>>, vector<1x16xf32>,
    } else {
    }
    %c0 = arith.constant 0 : index
    %c0_1 = arith.constant 0 : index
    %3 = vector.load %arg2[%c0, %c0_1] : memref<5x16xf32, #tpu.memory_space<vmem>>, vector<5x16xf32>
    %c0_2 = arith.constant 0 : index
    %c0_3 = arith.constant 0 : index
    %4 = vector.load %arg3[%c0_2, %c0_3] : memref<1x16xi32, #tpu.memory_space<vmem>>, vector<1x16xi32>
    %cst = arith.constant dense<0xFF800000> : vector<16xf32>
    %5 = vector.multi_reduction <maximumf>, %3, %cst [0] : vector<5x16xf32> to vector<16xf32>
    %6 = vector.shape_cast %5 : vector<16xf32> to vector<1x16xf32>
    %7 = vector.broadcast %6 : vector<1x16xf32> to vector<5x16xf32>
    %8 = arith.subf %3, %7 : vector<5x16xf32>
    %9 = math.exp %8 : vector<5x16xf32>
    %cst_4 = arith.constant dense<0.000000e+00> : vector<16xf32>
    %10 = vector.multi_reduction <add>, %9, %cst_4 [0] : vector<5x16xf32> to vector<16xf32>
    %11 = vector.shape_cast %10 : vector<16xf32> to vector<1x16xf32>
    %12 = math.log %11 : vector<1x16xf32>
    %13 = tpu.iota {dimensions = array<i32: 0>} : vector<5x16xi32>
    %14 = vector.broadcast %4 : vector<1x16xi32> to vector<5x16xi32>
    %15 = arith.cmpi eq, %13, %14 : vector<5x16xi32>
    %cst_5 = arith.constant 0.000000e+00 : f32
    %16 = vector.broadcast %cst_5 : f32 to vector<5x16xf32>
    %17 = arith.select %15, %8, %16 : vector<5x16xi1>, vector<5x16xf32>
    %cst_6 = arith.constant dense<0.000000e+00> : vector<16xf32>
    %18 = vector.multi_reduction <add>, %17, %cst_6 [0] : vector<5x16xf32> to vector<16xf32>
    %19 = vector.shape_cast %18 : vector<16xf32> to vector<1x16xf32>
    %20 = arith.subf %19, %12 : vector<1x16xf32>
    %cst_7 = arith.constant 1.000000e-01 : f32
    %21 = vector.broadcast %cst_7 : f32 to vector<1x16xf32>
    %22 = arith.mulf %21, %20 : vector<1x16xf32>
    %cst_8 = arith.constant -16.1180954 : f32
    %23 = vector.broadcast %cst_8 : f32 to vector<1x16xf32>
    %24 = arith.maximumf %20, %23 : vector<1x16xf32>
    %cst_9 = arith.constant 1.000000e+00 : f32
    %25 = vector.broadcast %cst_9 : f32 to vector<1x16xf32>
    %26 = arith.mulf %25, %24 : vector<1x16xf32>
    %27 = arith.addf %22, %26 : vector<1x16xf32>
    %cst_10 = arith.constant 0.000000e+00 : f32
    %28 = vector.broadcast %cst_10 : f32 to vector<1x16xf32>
    %29 = arith.subf %28, %27 : vector<1x16xf32>
    %c1_i32 = arith.constant 1 : i32
    %30 = arith.muli %arg0, %c1_i32 : i32
    %31 = arith.addi %30, %arg1 : i32
    %32 = tpu.iota {dimensions = array<i32: 1>} : vector<1x16xi32>
    %c16_i32 = arith.constant 16 : i32
    %33 = arith.muli %31, %c16_i32 : i32
    %34 = vector.broadcast %33 : i32 to vector<1x16xi32>
    %35 = arith.addi %34, %32 : vector<1x16xi32>
    %c16_i32_11 = arith.constant 16 : i32
    %36 = vector.broadcast %c16_i32_11 : i32 to vector<1x16xi32>
    %37 = arith.cmpi slt, %35, %36 : vector<1x16xi32>
    %cst_12 = arith.constant 0.000000e+00 : f32
    %38 = vector.broadcast %cst_12 : f32 to vector<1x16xf32>
    %39 = arith.select %37, %29, %38 : vector<1x16xi1>, vector<1x16xf32>
    %c0_13 = arith.constant 0 : index
    %c0_14 = arith.constant 0 : index
    %40 = vector.load %arg5[%c0_13, %c0_14] : memref<1x16xf32, #tpu.memory_space<vmem>>, vector<1x16xf32>
    %41 = arith.addf %40, %39 : vector<1x16xf32>
    %c0_15 = arith.constant 0 : index
    %c0_16 = arith.constant 0 : index
    %42 = vector.load %arg5[%c0_15, %c0_16] : memref<1x16xf32, #tpu.memory_space<vmem>>, vector<1x16xf32>
    tpu.vector_store %arg5[%c0_15, %c0_16], %41 {strides = array<i32>} : memref<1x16xf32, #tpu.memory_space<vmem>>, vector<1x16xf32>,
    %c0_i32_17 = arith.constant 0 : i32
    %43 = arith.cmpi eq, %arg1, %c0_i32_17 : i32
    %44 = arith.extui %43 : i1 to i32
    %c0_i32_18 = arith.constant 0 : i32
    %45 = arith.cmpi ne, %44, %c0_i32_18 : i32
    scf.if %45 {
      %c0_19 = arith.constant 0 : index
      %c0_20 = arith.constant 0 : index
      %46 = vector.load %arg5[%c0_19, %c0_20] : memref<1x16xf32, #tpu.memory_space<vmem>>, vector<1x16xf32>
      %c0_21 = arith.constant 0 : index
      %c0_22 = arith.constant 0 : index
      %47 = vector.load %arg4[%c0_21, %c0_22] : memref<1x16xf32, #tpu.memory_space<vmem>>, vector<1x16xf32>
      tpu.vector_store %arg4[%c0_21, %c0_22], %46 {strides = array<i32>} : memref<1x16xf32, #tpu.memory_space<vmem>>, vector<1x16xf32>,
    } else {
    }
    return
  }
  func.func @transform_0(%arg0: i32, %arg1: i32) -> (i32, i32) {
    %c1_i32 = arith.constant 1 : i32
    %0 = arith.muli %arg0, %c1_i32 : i32
    %1 = arith.addi %0, %arg1 : i32
    %c0_i32 = arith.constant 0 : i32
    %2 = arith.minsi %1, %c0_i32 : i32
    %c0_i32_0 = arith.constant 0 : i32
    %c0_i32_1 = arith.constant 0 : i32
    return %c0_i32_0, %2 : i32, i32
  }
  func.func @transform_1(%arg0: i32, %arg1: i32) -> (i32, i32) {
    %c1_i32 = arith.constant 1 : i32
    %0 = arith.muli %arg0, %c1_i32 : i32
    %1 = arith.addi %0, %arg1 : i32
    %c0_i32 = arith.constant 0 : i32
    %2 = arith.minsi %1, %c0_i32 : i32
    %c0_i32_0 = arith.constant 0 : i32
    %c0_i32_1 = arith.constant 0 : i32
    return %c0_i32_0, %2 : i32, i32
  }
  func.func @transform_2(%arg0: i32, %arg1: i32) -> (i32, i32) {
    %c0_i32 = arith.constant 0 : i32
    %c0_i32_0 = arith.constant 0 : i32
    return %c0_i32, %arg0 : i32, i32
  }
}

</mosaic_0001>

<llo_original>
// kernel: tpu_custom_call.1
$region0: #{tpu_custom_call.1}
  #allocation0 [shape = 'u32[]', space=smem, size = 0x4, offset = 0x4, fixed_abs, tag = 'smem constant byte address 0x4 - core index']
  #allocation1 [shape = 'u32[144,128]{1,0:T(1,128)}', space=vmem, size = 0x12000, scoped, tag = 'internal scratch']
  #allocation2 [shape = 'f32[1,16]{1,0:T(1,128)}', space=vmem, size = 0x200, scoped, tag = 'scratch operand']
  %s0 = inlined_call_operand.hbm [shape: f32[5,16], index: 0, kind: input, shape index: {}]
  %s1 = inlined_call_operand.vmem [shape: s32[1,16], index: 1, kind: input, shape index: {}]
  %s2 = inlined_call_operand.hbm [shape: f32[1,16], index: 2, kind: output, shape index: {}]
  %s3 = sld [smem:[#allocation0]]
  $region30: #{tpu_custom_call.1} parent=0
    _
  %s5 = ssub.s32 1, %s3
  %s6 = scalar_select 0, %s5, %s3
  $region1: #{tpu_custom_call.1} parent=0
    #allocation3 [shape = 'u8[4096]{0}', space=vmem, size = 0x1000, scoped, tag = 'input window, operand 0, single buffered']
    #allocation4 [shape = 's32[1]{0}', space=sflag, size = 0x4, scoped, tag = 'scoped memory for tpu_custom_call.1']
    #allocation5 [shape = 's32[1]{0}', space=sflag, size = 0x4, scoped, tag = 'scoped memory for tpu_custom_call.1']
    #allocation6 [shape = 'u8[512]{0}', space=vmem, size = 0x400, scoped, tag = 'output window, operand 0, single buffered']
    %7 = vsyncpa [#allocation4], 0
    %8 = vsyncpa [#allocation5], 0
    // Predicated region
    $region2: #{tpu_custom_call.1} parent=1 // pred_check
      _
    $region3: #{tpu_custom_call.1} parent=1 // pred_check_branch
      %10 = sbr.rel (0) target = $region5
    $region4: #{tpu_custom_call.1} parent=1 // pred_region
      %s11 = sadd.s32 0, 0
      %p12 = scmp.lt.s32.totalorder %s11, 0
      %s13 = scalar_select %p12, %s11, 0
      %s15 = ssub.s32 128, 128
      %16 = vsyncadd [#allocation4], %s15
      %s17 = smul.addr %s13, 128
      %s18 = scalar_lea.hbm %s0, %s17
      %s20 = sshll.u32 [#allocation3], 4
      %s21 = int_to_ptr.vmem [resolvable:$true] %s20
      %23 = dma.hbm_to_vmem [thread:$0]  %s18, 128, %s21, [#allocation4]
    $region5: #{tpu_custom_call.1} parent=1 // pred_fallthru
      _
    // Predicated region
    $region6: #{tpu_custom_call.1} parent=1 // pred_check
      _
    $region7: #{tpu_custom_call.1} parent=1 // pred_check_branch
      %25 = sbr.rel (0) target = $region9
    $region8: #{tpu_custom_call.1} parent=1 // pred_region
      %s26 = sadd.s32 0, 0
      %p27 = scmp.lt.s32.totalorder %s26, 0
      %s28 = scalar_select %p27, %s26, 0
      %p29 = scmp.lt.s32.totalorder %s28, 0
      %s30 = scalar_select %p29, %s28, 0
      %s31 = scalar_lea.vmem %s1, %s30
      %s32 = sadd.s32 0, 0
      %p33 = scmp.lt.s32.totalorder %s32, 0
      %s34 = scalar_select %p33, %s32, 0
    $region9: #{tpu_custom_call.1} parent=1 // pred_fallthru
      _
    // Predicated region
    $region10: #{tpu_custom_call.1} parent=1 // pred_check
      _
    $region11: #{tpu_custom_call.1} parent=1 // pred_check_branch
      %36 = sbr.rel (0) target = $region13
    $region12: #{tpu_custom_call.1} parent=1 // pred_region
      %37 = dma.done [#allocation4], 128
    $region13: #{tpu_custom_call.1} parent=1 // pred_fallthru
      _
    %s38 = sadd.s32 0, 0
    %p39 = scmp.lt.s32.totalorder %s38, 0
    %s40 = scalar_select %p39, %s38, 0
    %p41 = scmp.lt.s32.totalorder %s40, 0
    %s42 = scalar_select %p41, %s40, 0
    %s43 = scalar_lea.vmem %s1, %s42
    %s44 = sadd.s32 0, 0
    %p45 = scmp.lt.s32.totalorder %s44, 0
    %s46 = scalar_select %p45, %s44, 0
    %s47 = sadd.s32 0, 0
    %p48 = scmp.lt.s32.totalorder %s47, 0
    %s49 = scalar_select %p48, %s47, 0
    %p50 = scmp.lt.s32.totalorder %s49, 0
    %s51 = scalar_select %p50, %s49, 0
    %s52 = scalar_lea.vmem %s1, %s51
    %s53 = sadd.s32 0, 0
    %p54 = scmp.lt.s32.totalorder %s53, 0
    %s55 = scalar_select %p54, %s53, 0
    %p56 = scmp.eq.s32.totalorder 0, 0
    // Predicated region
    $region14: #{tpu_custom_call.1} parent=1 // pred_check
      %p57 = pneg %p56
    $region15: #{tpu_custom_call.1} parent=1 // pred_check_branch
      %59 = sbr.rel (%p57) target = $region17
    $region16: #{tpu_custom_call.1} parent=1 // pred_region
      %vm60 = vcmask 122880
      %61 = vst.msk [vmem:[#allocation2] sm:$0x1] %vm60, 0.0
    $region17: #{tpu_custom_call.1} parent=1 // pred_fallthru
      _
    %v62 = vld [vmem:[#allocation3] sm:$0x1f]
    %v63 = vld [vmem:[%s52] sm:$0x1]
    %vm64 = vcmask 126976
    %v65 = vsel %vm64, %v62, -inf
    %v66 = vrot.slane %v65, 4
    %v67 = vmax.f32 %v65, %v66
    %v68 = vrot.slane %v67, 2
    %v69 = vmax.f32 %v67, %v68
    %v70 = vrot.slane %v69, 1
    %v71 = vmax.f32 %v69, %v70
    %v72 = vsub.f32 %v62, %v71
    %v73 = vmul.f32 %v72, 1.442695
    %v74 = vpow.pop %v73
    %v75 = vsel %vm64, %v74, 0.0
    %v76 = vrot.slane %v75, 4
    %v77 = vadd.f32 %v75, %v76
    %v78 = vrot.slane %v77, 2
    %v79 = vadd.f32 %v77, %v78
    %v80 = vrot.slane %v79, 1
    %v81 = vadd.f32 %v79, %v80
    %v82 = vlog2.pop %v81
    %v83 = vmul.f32 %v82, 0.6931472
    %v84 = vlaneseq
    %v85 = vshrl.u32 %v84, 7
    %v86 = vlaneseq
    %v87 = vshrl.u32 %v86, 7
    %v88 = vsub.s32 0, %v87
    %v89 = vrot.slane %v63, %v88
    %vm90 = vcmp.eq.s32.totalorder %v85, %v89
    %v91 = vsel %vm90, %v72, 0.0
    %v92 = vsel %vm64, %v91, 0.0
    %v93 = vrot.slane %v92, 4
    %v94 = vadd.f32 %v92, %v93
    %v95 = vrot.slane %v94, 2
    %v96 = vadd.f32 %v94, %v95
    %v97 = vrot.slane %v96, 1
    %v98 = vadd.f32 %v96, %v97
    %v99 = vsub.f32 %v98, %v83
    %v100 = vmul.f32 %v99, 0.1
    %v101 = vmax.f32 %v99, -16.118095
    %v102 = vadd.f32 %v100, %v101
    %v103 = vsub.f32 0.0, %v102
    %s104 = sadd.s32 0, 0
    %v105 = vlaneseq
    %v106 = vand.u32 %v105, 127
    %s107 = smul.u32 %s104, 16
    %v108 = vstv %s107
    %v109 = vadd.s32 %v108, %v106
    %vm110 = vcmp.lt.s32.totalorder %v109, 16
    %v111 = vsel %vm110, %v103, 0.0
    %v112 = vld [vmem:[#allocation2] sm:$0x1]
    %v113 = vadd.f32 %v112, %v111
    %vm114 = vcmask 122880
    %115 = vst.msk [vmem:[#allocation2] sm:$0x1] %vm114, %v113
    // Predicated region
    $region18: #{tpu_custom_call.1} parent=1 // pred_check
      %p116 = pneg %p56
    $region19: #{tpu_custom_call.1} parent=1 // pred_check_branch
      %118 = sbr.rel (%p116) target = $region21
    $region20: #{tpu_custom_call.1} parent=1 // pred_region
      %v119 = vld [vmem:[#allocation2] sm:$0x1]
      %120 = vst.msk [vmem:[#allocation6] sm:$0x1] %vm114, %v119
    $region21: #{tpu_custom_call.1} parent=1 // pred_fallthru
      _
    // Predicated region
    $region22: #{tpu_custom_call.1} parent=1 // pred_check
      _
    $region23: #{tpu_custom_call.1} parent=1 // pred_check_branch
      %122 = sbr.rel (0) target = $region25
    $region24: #{tpu_custom_call.1} parent=1 // pred_region
      %s124 = ssub.s32 16, 16
      %125 = vsyncadd [#allocation5], %s124
      %s127 = sshll.u32 [#allocation6], 4
      %s128 = int_to_ptr.vmem [resolvable:$true] %s127
      %130 = dma.vmem_to_hbm [thread:$0]  %s128, 16, %s2, [#allocation5]
    $region25: #{tpu_custom_call.1} parent=1 // pred_fallthru
      _
    // Predicated region
    $region26: #{tpu_custom_call.1} parent=1 // pred_check
      _
    $region27: #{tpu_custom_call.1} parent=1 // pred_check_branch
      %132 = sbr.rel (0) target = $region29
    $region28: #{tpu_custom_call.1} parent=1 // pred_region
      %133 = dma.done [#allocation5], 16
    $region29: #{tpu_custom_call.1} parent=1 // pred_fallthru
      _
    %134 = vsyncpa [#allocation4], 1
    %135 = vsyncpa [#allocation5], 1

</llo_original>
